<compile_context>
chip_gen: v7x
topology: tpu7x:2x2x1
jax: 0.10.0
libtpu: 0.0.40
codegen_flags: <defaults>
</compile_context>

<pallas_src>
import jax
import jax.numpy as jnp
from jax.experimental import pallas as pl
from jax.experimental.pallas import tpu as pltpu

_LANES = 128
_MAX_TILE_ROWS = 2048      # 2048*128 elems: ~5.25 MiB/buffer set, x2 bufs ~10.5 MiB VMEM
_SINGLE_BLOCK_ROWS = 256   # below this the workload is dispatch-bound; use one block


def _elementwise_kernel(x_ref, add_ref, sub_ref, mul_ref, div_ref, cmp_ref):
    x = x_ref[...]
    # Float results (store-bound; one vst stream each, all lane-dense).
    add_ref[...] = x + 5.0
    sub_ref[...] = x - 3.0
    mul_ref[...] = x * 2.0
    div_ref[...] = x * 0.25          # x / 4 (exact for f32: 4 is a power of two)
    # Bit-pack the three comparisons into one uint8 slab (1 B/elem writeback).
    gt = (x > 2.0).astype(jnp.int32)
    lt = (x < 5.0).astype(jnp.int32)
    eq = (x == 3.0).astype(jnp.int32)
    cmp_ref[...] = (gt | (lt << 1) | (eq << 2)).astype(jnp.uint8)


def pt_module_forward(x):
    orig_shape = x.shape
    orig_dtype = x.dtype
    total = x.size

    # Flatten to a lane-dense 2D slab, (8,128)-aligned.
    rows = -(-total // _LANES)            # ceil
    rows_padded = -(-rows // 8) * 8       # multiple of 8 sublanes

    if rows_padded <= _SINGLE_BLOCK_ROWS:
        # Tiny inputs: single block (full-array block shapes are always legal).
        tile_rows = rows_padded
    else:
        # Split into >= 2 tiles so the parallel axis shards across both v7x
        # TensorCores; cap at _MAX_TILE_ROWS.  Tiles are multiples of 32 rows
        # so the uint8 output satisfies its (32,128) tiling constraint.
        half = -(-rows_padded // 2)
        tile_rows = min(_MAX_TILE_ROWS, -(-half // 32) * 32)
        rows_padded = -(-rows_padded // tile_rows) * tile_rows
    padded_total = rows_padded * _LANES
    grid_n = rows_padded // tile_rows

    # Only cast / pad when actually required (f32 inputs that already fill the
    # slab — like the 2x4x16x16 test case — take the zero-copy path).
    x_flat = jnp.ravel(x)
    if x_flat.dtype != jnp.float32:
        x_flat = x_flat.astype(jnp.float32)
    if padded_total != total:
        x_flat = jnp.pad(x_flat, (0, padded_total - total))
    x2d = x_flat.reshape(rows_padded, _LANES)

    f_shape = jax.ShapeDtypeStruct((rows_padded, _LANES), jnp.float32)
    c_shape = jax.ShapeDtypeStruct((rows_padded, _LANES), jnp.uint8)
    blk = pl.BlockSpec((tile_rows, _LANES), lambda i: (i, 0))

    cost = pl.CostEstimate(
        flops=14 * padded_total,                      # 4 arith + 3 cmp + pack
        transcendentals=0,
        bytes_accessed=(4 + 16 + 1) * padded_total,   # 1 f32 in, 4 f32 + 1 u8 out
    )

    add_o, sub_o, mul_o, div_o, cmp_o = pl.pallas_call(
        _elementwise_kernel,
        out_shape=(f_shape, f_shape, f_shape, f_shape, c_shape),
        grid=(grid_n,),
        in_specs=[blk],
        out_specs=(blk, blk, blk, blk, blk),
        compiler_params=pltpu.CompilerParams(
            dimension_semantics=("parallel",),
            vmem_limit_bytes=32 * 1024 * 1024),
        cost_estimate=cost,
    )(x2d)

    def _unflat(a):
        if padded_total != total:
            a = a.reshape(-1)[:total]
        return a.reshape(orig_shape)

    def _to_orig(a):
        a = _unflat(a)
        return a if a.dtype == orig_dtype else a.astype(orig_dtype)

    cmp = _unflat(cmp_o)
    return {
        'addition': _to_orig(add_o),
        'subtraction': _to_orig(sub_o),
        'multiplication': _to_orig(mul_o),
        'division': _to_orig(div_o),
        'greater_than': (cmp & 1).astype(jnp.bool_),
        'less_than': ((cmp >> 1) & 1).astype(jnp.bool_),
        'equal_to': ((cmp >> 2) & 1).astype(jnp.bool_),
    }


if __name__ == "__main__":
    key = jax.random.PRNGKey(0)
    x = jax.random.normal(key, (2, 4, 16, 16), dtype=jnp.float32) * 4.0
    # Sprinkle in some exact 3.0 values so equal_to has hits.
    x = x.at[0, 0, 0, :4].set(3.0)

    out = jax.jit(pt_module_forward)(x)
    jax.block_until_ready(out)

    # Reference check against plain jnp.
    ref = {
        'addition': x + 5,
        'subtraction': x - 3,
        'multiplication': x * 2,
        'division': x / 4,
        'greater_than': x > 2,
        'less_than': x < 5,
        'equal_to': x == 3,
    }
    for k in ref:
        if ref[k].dtype == jnp.bool_:
            assert bool(jnp.all(out[k] == ref[k])), k
        else:
            assert bool(jnp.allclose(out[k], ref[k], atol=1e-6)), k
        assert out[k].shape == ref[k].shape, k
        assert out[k].dtype == ref[k].dtype, k

    print("KERNEL_OK")
</pallas_src>

<mosaic_0001>
module attributes {stable_mosaic.version = 11 : i64} {
  func.func @_elementwise_kernel(%arg0: i32, %arg1: memref<16x128xf32, #tpu.memory_space<vmem>>, %arg2: memref<16x128xf32, #tpu.memory_space<vmem>>, %arg3: memref<16x128xf32, #tpu.memory_space<vmem>>, %arg4: memref<16x128xf32, #tpu.memory_space<vmem>>, %arg5: memref<16x128xf32, #tpu.memory_space<vmem>>, %arg6: memref<16x128xi8, #tpu.memory_space<vmem>>) attributes {dimension_semantics = [#tpu.dimension_semantics<parallel>], iteration_bounds = array<i64: 1>, scalar_prefetch = 0 : i64, scratch_operands = 0 : i64, tpu.core_type = #tpu.core_type<tc>, window_params = [{transform_indices = @transform_0, window_bounds = array<i64: 16, 128>}, {transform_indices = @transform_1, window_bounds = array<i64: 16, 128>}, {transform_indices = @transform_2, window_bounds = array<i64: 16, 128>}, {transform_indices = @transform_3, window_bounds = array<i64: 16, 128>}, {transform_indices = @transform_4, window_bounds = array<i64: 16, 128>}, {transform_indices = @transform_5, window_bounds = array<i64: 16, 128>}]} {
    %c0 = arith.constant 0 : index
    %c0_0 = arith.constant 0 : index
    %0 = vector.load %arg1[%c0, %c0_0] : memref<16x128xf32, #tpu.memory_space<vmem>>, vector<16x128xf32>
    %cst = arith.constant 5.000000e+00 : f32
    %1 = vector.broadcast %cst : f32 to vector<16x128xf32>
    %2 = arith.addf %0, %1 : vector<16x128xf32>
    %c0_1 = arith.constant 0 : index
    %c0_2 = arith.constant 0 : index
    %3 = vector.load %arg2[%c0_1, %c0_2] : memref<16x128xf32, #tpu.memory_space<vmem>>, vector<16x128xf32>
    tpu.vector_store %arg2[%c0_1, %c0_2], %2 {strides = array<i32>} : memref<16x128xf32, #tpu.memory_space<vmem>>, vector<16x128xf32>,
    %cst_3 = arith.constant 3.000000e+00 : f32
    %4 = vector.broadcast %cst_3 : f32 to vector<16x128xf32>
    %5 = arith.subf %0, %4 : vector<16x128xf32>
    %c0_4 = arith.constant 0 : index
    %c0_5 = arith.constant 0 : index
    %6 = vector.load %arg3[%c0_4, %c0_5] : memref<16x128xf32, #tpu.memory_space<vmem>>, vector<16x128xf32>
    tpu.vector_store %arg3[%c0_4, %c0_5], %5 {strides = array<i32>} : memref<16x128xf32, #tpu.memory_space<vmem>>, vector<16x128xf32>,
    %cst_6 = arith.constant 2.000000e+00 : f32
    %7 = vector.broadcast %cst_6 : f32 to vector<16x128xf32>
    %8 = arith.mulf %0, %7 : vector<16x128xf32>
    %c0_7 = arith.constant 0 : index
    %c0_8 = arith.constant 0 : index
    %9 = vector.load %arg4[%c0_7, %c0_8] : memref<16x128xf32, #tpu.memory_space<vmem>>, vector<16x128xf32>
    tpu.vector_store %arg4[%c0_7, %c0_8], %8 {strides = array<i32>} : memref<16x128xf32, #tpu.memory_space<vmem>>, vector<16x128xf32>,
    %cst_9 = arith.constant 2.500000e-01 : f32
    %10 = vector.broadcast %cst_9 : f32 to vector<16x128xf32>
    %11 = arith.mulf %0, %10 : vector<16x128xf32>
    %c0_10 = arith.constant 0 : index
    %c0_11 = arith.constant 0 : index
    %12 = vector.load %arg5[%c0_10, %c0_11] : memref<16x128xf32, #tpu.memory_space<vmem>>, vector<16x128xf32>
    tpu.vector_store %arg5[%c0_10, %c0_11], %11 {strides = array<i32>} : memref<16x128xf32, #tpu.memory_space<vmem>>, vector<16x128xf32>,
    %cst_12 = arith.constant 2.000000e+00 : f32
    %13 = vector.broadcast %cst_12 : f32 to vector<16x128xf32>
    %14 = arith.cmpf ogt, %0, %13 : vector<16x128xf32>
    %15 = arith.extui %14 : vector<16x128xi1> to vector<16x128xi32>
    %cst_13 = arith.constant 5.000000e+00 : f32
    %16 = vector.broadcast %cst_13 : f32 to vector<16x128xf32>
    %17 = arith.cmpf olt, %0, %16 : vector<16x128xf32>
    %18 = arith.extui %17 : vector<16x128xi1> to vector<16x128xi32>
    %cst_14 = arith.constant 3.000000e+00 : f32
    %19 = vector.broadcast %cst_14 : f32 to vector<16x128xf32>
    %20 = arith.cmpf oeq, %0, %19 : vector<16x128xf32>
    %21 = arith.extui %20 : vector<16x128xi1> to vector<16x128xi32>
    %c1_i32 = arith.constant 1 : i32
    %22 = vector.broadcast %c1_i32 : i32 to vector<16x128xi32>
    %23 = arith.shli %18, %22 : vector<16x128xi32>
    %24 = arith.ori %15, %23 : vector<16x128xi32>
    %c2_i32 = arith.constant 2 : i32
    %25 = vector.broadcast %c2_i32 : i32 to vector<16x128xi32>
    %26 = arith.shli %21, %25 : vector<16x128xi32>
    %27 = arith.ori %24, %26 : vector<16x128xi32>
    %28 = arith.trunci %27 : vector<16x128xi32> to vector<16x128xi8>
    %c0_15 = arith.constant 0 : index
    %c0_16 = arith.constant 0 : index
    %29 = vector.load %arg6[%c0_15, %c0_16] : memref<16x128xi8, #tpu.memory_space<vmem>>, vector<16x128xi8>
    tpu.vector_store %arg6[%c0_15, %c0_16], %28 {strides = array<i32>} : memref<16x128xi8, #tpu.memory_space<vmem>>, vector<16x128xi8>,
    return
  }
  func.func @transform_0(%arg0: i32) -> (i32, i32) {
    %c0_i32 = arith.constant 0 : i32
    %c0_i32_0 = arith.constant 0 : i32
    return %arg0, %c0_i32 : i32, i32
  }
  func.func @transform_1(%arg0: i32) -> (i32, i32) {
    %c0_i32 = arith.constant 0 : i32
    %c0_i32_0 = arith.constant 0 : i32
    return %arg0, %c0_i32 : i32, i32
  }
  func.func @transform_2(%arg0: i32) -> (i32, i32) {
    %c0_i32 = arith.constant 0 : i32
    %c0_i32_0 = arith.constant 0 : i32
    return %arg0, %c0_i32 : i32, i32
  }
  func.func @transform_3(%arg0: i32) -> (i32, i32) {
    %c0_i32 = arith.constant 0 : i32
    %c0_i32_0 = arith.constant 0 : i32
    return %arg0, %c0_i32 : i32, i32
  }
  func.func @transform_4(%arg0: i32) -> (i32, i32) {
    %c0_i32 = arith.constant 0 : i32
    %c0_i32_0 = arith.constant 0 : i32
    return %arg0, %c0_i32 : i32, i32
  }
  func.func @transform_5(%arg0: i32) -> (i32, i32) {
    %c0_i32 = arith.constant 0 : i32
    %c0_i32_0 = arith.constant 0 : i32
    return %arg0, %c0_i32 : i32, i32
  }
}

</mosaic_0001>

<llo_original>
// kernel: pt_module_forward.1
$region0: #{pt_module_forward.1}
  #allocation0 [shape = 'u32[]', space=smem, size = 0x4, offset = 0x4, fixed_abs, tag = 'smem constant byte address 0x4 - core index']
  #allocation1 [shape = 'u32[144,128]{1,0:T(1,128)}', space=vmem, size = 0x12000, scoped, tag = 'internal scratch']
  %s0 = inlined_call_operand.vmem [shape: f32[16,128], index: 0, kind: input, shape index: {}]
  %s1 = inlined_call_operand.vmem [shape: f32[16,128], index: 1, kind: output, shape index: {0}]
  %s2 = inlined_call_operand.vmem [shape: f32[16,128], index: 2, kind: output, shape index: {1}]
  %s3 = inlined_call_operand.vmem [shape: f32[16,128], index: 3, kind: output, shape index: {2}]
  %s4 = inlined_call_operand.vmem [shape: f32[16,128], index: 4, kind: output, shape index: {3}]
  %s5 = inlined_call_operand.vmem [shape: u8[16,128], index: 5, kind: output, shape index: {4}]
  %6 = xla_tuple %s1, %s2, %s3, %s4, %s5
  %s7 = sld [smem:[#allocation0]]
  $region46: #{pt_module_forward.1} parent=0
    _
  %s9 = ssub.s32 1, %s7
  %s10 = scalar_select 0, %s9, %s7
  // Predicated region
  $region2: #{pt_module_forward.1} parent=0 // pred_check
    _
  $region3: #{pt_module_forward.1} parent=0 // pred_check_branch
    %12 = sbr.rel (0) target = $region5
  $region4: #{pt_module_forward.1} parent=0 // pred_region
    _
  $region5: #{pt_module_forward.1} parent=0 // pred_fallthru
    _
  %v13 = vld [vmem:[%s0] sm:$0xff]
  %v14 = vld [vmem:[%s0 + $0x8] sm:$0xff]
  %v15 = vadd.f32 %v13, 5.0
  %v16 = vadd.f32 %v14, 5.0
  %17 = vst [vmem:[%s1] sm:$0xff] %v15
  %18 = vst [vmem:[%s1 + $0x8] sm:$0xff] %v16
  %v19 = vsub.f32 %v13, 3.0
  %v20 = vsub.f32 %v14, 3.0
  %21 = vst [vmem:[%s2] sm:$0xff] %v19
  %22 = vst [vmem:[%s2 + $0x8] sm:$0xff] %v20
  %v23 = vmul.f32 %v13, 2.0
  %v24 = vmul.f32 %v14, 2.0
  %25 = vst [vmem:[%s3] sm:$0xff] %v23
  %26 = vst [vmem:[%s3 + $0x8] sm:$0xff] %v24
  %v27 = vmul.f32 %v13, 0.25
  %v28 = vmul.f32 %v14, 0.25
  %29 = vst [vmem:[%s4] sm:$0xff] %v27
  %30 = vst [vmem:[%s4 + $0x8] sm:$0xff] %v28
  %vm31 = vcmp.gt.f32.partialorder %v13, 2.0
  %vm32 = vcmp.gt.f32.partialorder %v14, 2.0
  %v33 = vsel %vm31, 1, 0
  %v34 = vsel %vm32, 1, 0
  %vm35 = vcmp.lt.f32.partialorder %v13, 5.0
  %vm36 = vcmp.lt.f32.partialorder %v14, 5.0
  %v37 = vsel %vm35, 1, 0
  %v38 = vsel %vm36, 1, 0
  %vm39 = vcmp.eq.f32.partialorder %v13, 3.0
  %vm40 = vcmp.eq.f32.partialorder %v14, 3.0
  %v41 = vsel %vm39, 1, 0
  %v42 = vsel %vm40, 1, 0
  %v43 = vshll.u32 %v37, 1
  %v44 = vshll.u32 %v38, 1
  %v45 = vor.u32 %v33, %v43
  %v46 = vor.u32 %v34, %v44
  %v47 = vshll.u32 %v41, 2
  %v48 = vshll.u32 %v42, 2
  %v49 = vor.u32 %v45, %v47
  %v50 = vor.u32 %v46, %v48
  %v51 = vpack.c.b16 %v49, %v49
  %v52 = vpack.c.b8 %v51, %v51
  %v53 = vpack.c.b16 %v50, %v50
  %v54 = vpack.c.b8 %v53, %v53
  %55 = vst [vmem:[%s5] sm:$0x3] %v52
  %56 = vst [vmem:[%s5 + $0x2] sm:$0x3] %v54
  // Predicated region
  $region6: #{pt_module_forward.1} parent=0 // pred_check
    _
  $region7: #{pt_module_forward.1} parent=0 // pred_check_branch
    %58 = sbr.rel (0) target = $region9
  $region8: #{pt_module_forward.1} parent=0 // pred_region
    _
  $region9: #{pt_module_forward.1} parent=0 // pred_fallthru
    _
  // Predicated region
  $region10: #{pt_module_forward.1} parent=0 // pred_check
    _
  $region11: #{pt_module_forward.1} parent=0 // pred_check_branch
    %60 = sbr.rel (0) target = $region13
  $region12: #{pt_module_forward.1} parent=0 // pred_region
    _
  $region13: #{pt_module_forward.1} parent=0 // pred_fallthru
    _
  // Predicated region
  $region14: #{pt_module_forward.1} parent=0 // pred_check
    _
  $region15: #{pt_module_forward.1} parent=0 // pred_check_branch
    %62 = sbr.rel (0) target = $region17
  $region16: #{pt_module_forward.1} parent=0 // pred_region
    _
  $region17: #{pt_module_forward.1} parent=0 // pred_fallthru
    _
  // Predicated region
  $region18: #{pt_module_forward.1} parent=0 // pred_check
    _
  $region19: #{pt_module_forward.1} parent=0 // pred_check_branch
    %64 = sbr.rel (0) target = $region21
  $region20: #{pt_module_forward.1} parent=0 // pred_region
    _
  $region21: #{pt_module_forward.1} parent=0 // pred_fallthru
    _
  // Predicated region
  $region22: #{pt_module_forward.1} parent=0 // pred_check
    _
  $region23: #{pt_module_forward.1} parent=0 // pred_check_branch
    %66 = sbr.rel (0) target = $region25
  $region24: #{pt_module_forward.1} parent=0 // pred_region
    _
  $region25: #{pt_module_forward.1} parent=0 // pred_fallthru
    _
  // Predicated region
  $region26: #{pt_module_forward.1} parent=0 // pred_check
    _
  $region27: #{pt_module_forward.1} parent=0 // pred_check_branch
    %68 = sbr.rel (0) target = $region29
  $region28: #{pt_module_forward.1} parent=0 // pred_region
    _
  $region29: #{pt_module_forward.1} parent=0 // pred_fallthru
    _
  // Predicated region
  $region30: #{pt_module_forward.1} parent=0 // pred_check
    _
  $region31: #{pt_module_forward.1} parent=0 // pred_check_branch
    %70 = sbr.rel (0) target = $region33
  $region32: #{pt_module_forward.1} parent=0 // pred_region
    _
  $region33: #{pt_module_forward.1} parent=0 // pred_fallthru
    _
  // Predicated region
  $region34: #{pt_module_forward.1} parent=0 // pred_check
    _
  $region35: #{pt_module_forward.1} parent=0 // pred_check_branch
    %72 = sbr.rel (0) target = $region37
  $region36: #{pt_module_forward.1} parent=0 // pred_region
    _
  $region37: #{pt_module_forward.1} parent=0 // pred_fallthru
    _
  // Predicated region
  $region38: #{pt_module_forward.1} parent=0 // pred_check
    _
  $region39: #{pt_module_forward.1} parent=0 // pred_check_branch
    %74 = sbr.rel (0) target = $region41
  $region40: #{pt_module_forward.1} parent=0 // pred_region
    _
  $region41: #{pt_module_forward.1} parent=0 // pred_fallthru
    _
  // Predicated region
  $region42: #{pt_module_forward.1} parent=0 // pred_check
    _
  $region43: #{pt_module_forward.1} parent=0 // pred_check_branch
    %76 = sbr.rel (0) target = $region45
  $region44: #{pt_module_forward.1} parent=0 // pred_region
    _
  $region45: #{pt_module_forward.1} parent=0 // pred_fallthru
    _

</llo_original>
